<compile_context>
chip_gen: v5e
topology: v5e:2x2
jax: 0.10.0
libtpu: 0.0.40
codegen_flags: <defaults>
</compile_context>

<pallas_src>
import functools

import jax
import jax.numpy as jnp
from jax import lax
from jax.experimental import pallas as pl
from jax.experimental.pallas import tpu as pltpu


def _round_up(n, m):
    return (n + m - 1) // m * m


def _mlp_kernel(x_ref, w1_ref, b1_ref, w2_ref, b2_ref, w3_ref, b3_ref, oT_ref):
    """One batch tile: out^T = W3 @ relu(W2 @ relu(W1 @ x_tile^T + b1) + b2) + b3.

    x_ref is the native-layout [bt, F] f32 tile; the transpose onto the lane
    (batch) axis is folded into the first contraction, so every intermediate
    ([H, bt], [H2, bt]) and the output tile ([8, bt]) is lane-dense.
    """
    x = x_ref[...].astype(jnp.bfloat16)                      # [bt, F] cast in-kernel

    # layer1: Linear(input_size, hidden) + ReLU.
    # Contract F of W1[H, F] with F of x[bt, F]  ->  h1[H, bt] (f32 accumulate).
    nt = (((1,), (1,)), ((), ()))
    h1 = lax.dot_general(w1_ref[...], x, nt, preferred_element_type=jnp.float32)
    h1 = jnp.maximum(h1 + b1_ref[...], 0.0)

    # dropout(p=0.3): identity in eval mode, elided.
    # TODO(synk): training-mode dropout would use pltpu.prng_seed / prng_random_bits.

    # layer2: Linear(hidden, hidden//2) + ReLU.
    h2 = jnp.dot(w2_ref[...], h1.astype(jnp.bfloat16),
                 preferred_element_type=jnp.float32)
    h2 = jnp.maximum(h2 + b2_ref[...], 0.0)

    # output: Linear(hidden//2, num_classes)  (rows zero-padded to 8).
    outT = jnp.dot(w3_ref[...], h2.astype(jnp.bfloat16),
                   preferred_element_type=jnp.float32) + b3_ref[...]
    oT_ref[...] = outT.astype(oT_ref.dtype)


def prepare_params(params):
    """One-time layout/dtype prep (at model-load time, NOT per forward call).

    Weights keep PyTorch-native [out, in] layout, cast to bf16 (note: bf16
    weights deviate ~1e-2 relative from the f32 PyTorch logits — fine for
    inference). Biases become f32 column vectors [out, 1] so they broadcast
    across the lane (batch) axis. The output layer is zero-padded to 8 rows so
    the kernel's output stores are sublane-aligned (unmasked vst).
    """
    w3 = jnp.asarray(params["w3"], jnp.float32)
    b3 = jnp.asarray(params["b3"], jnp.float32)
    c = w3.shape[0]
    c_pad = _round_up(c, 8)
    w3 = jnp.pad(w3, ((0, c_pad - c), (0, 0)))
    b3 = jnp.pad(b3, ((0, c_pad - c),))
    return {
        "w1": jnp.asarray(params["w1"], jnp.bfloat16),
        "w2": jnp.asarray(params["w2"], jnp.bfloat16),
        "w3": w3.astype(jnp.bfloat16),
        "b1": jnp.asarray(params["b1"], jnp.float32).reshape(-1, 1),
        "b2": jnp.asarray(params["b2"], jnp.float32).reshape(-1, 1),
        "b3": b3.reshape(-1, 1),
    }


@functools.partial(jax.jit, static_argnames=("num_classes", "block_b"))
def phishing_mlp_forward(x, params, *, num_classes, block_b=4096):
    """x: [B, input_size] f32. params: prepare_params() output. Returns [B, C] f32."""
    B, F = x.shape
    w1, w2, w3 = params["w1"], params["w2"], params["w3"]
    b1, b2, b3 = params["b1"], params["b2"], params["b3"]
    H = w1.shape[0]
    H2 = w2.shape[0]
    C_pad = w3.shape[0]

    # Batch tile: multiple of 128 (lane-dense, (8,128)-legal) and capped at
    # ceil(B/2) so the grid has >=2 steps whenever possible (dual-TC on v7x).
    bt = min(_round_up(block_b, 128), _round_up(pl.cdiv(B, 2), 128))
    B_pad = _round_up(B, bt)
    nb = B_pad // bt

    # Pad the batch to a whole number of tiles (no transpose/cast on the host;
    # a no-op whenever B is already a tile multiple). Padding rows compute
    # relu(bias) garbage that is sliced off below.
    x_p = jnp.pad(x, ((0, B_pad - B), (0, 0))) if B_pad != B else x

    cost = pl.CostEstimate(
        flops=2 * B_pad * (F * H + H * H2 + H2 * C_pad),
        transcendentals=0,
        bytes_accessed=(
            B_pad * F * 4                                  # f32 x read in-kernel
            + (w1.size + w2.size + w3.size) * 2            # bf16 resident weights
            + (b1.size + b2.size + b3.size) * 4            # f32 biases
            + C_pad * B_pad * 4                            # f32 output
        ),
    )

    # VMEM footprint (double-buffered x / out tiles + f32 intermediates +
    # resident weights); budget with 2x headroom against v7x's 64 MiB physical.
    vmem_est = (
        2 * bt * F * 4
        + 2 * C_pad * bt * 4
        + (H + H2) * bt * 4
        + (w1.size + w2.size + w3.size) * 2
        + (b1.size + b2.size + b3.size) * 4
    )
    vmem_limit = int(min(max(32 * 1024 * 1024, 2 * vmem_est), 64 * 1024 * 1024))

    # Constant index_map -> weights/biases stay VMEM-resident across grid steps.
    resident = lambda shape: pl.BlockSpec(shape, lambda i: (0, 0))

    outT = pl.pallas_call(
        _mlp_kernel,
        out_shape=jax.ShapeDtypeStruct((C_pad, B_pad), jnp.float32),
        grid=(nb,),
        in_specs=[
            pl.BlockSpec((bt, F), lambda i: (i, 0)),       # native-layout x tile
            resident((H, F)), resident((H, 1)),            # layer1
            resident((H2, H)), resident((H2, 1)),          # layer2
            resident((C_pad, H2)), resident((C_pad, 1)),   # output layer (padded rows)
        ],
        out_specs=pl.BlockSpec((C_pad, bt), lambda i: (0, i)),
        compiler_params=pltpu.CompilerParams(
            dimension_semantics=("parallel",),             # dual-TC sharding on v7x
            vmem_limit_bytes=vmem_limit,
        ),
        cost_estimate=cost,
    )(x_p, w1, b1, w2, b2, w3, b3)

    return outT[:num_classes, :B].T                        # back to [B, num_classes]


def phishing_forward(x, params, *, num_classes, block_b=4096, min_pallas_batch=256):
    """Dispatcher: tiny batches aren't worth the Pallas launch + pad-to-128."""
    if x.shape[0] < min_pallas_batch:
        return reference_forward(x, params, num_classes)
    return phishing_mlp_forward(x, params, num_classes=num_classes, block_b=block_b)


def init_params(key, input_size, hidden_size=64, num_classes=2):
    """Deterministic synthetic init with PyTorch nn.Linear shapes ([out, in] weights)."""
    ks = jax.random.split(key, 6)
    half = hidden_size // 2

    def uinit(k, shape, fan_in):
        bound = 1.0 / jnp.sqrt(fan_in)
        return jax.random.uniform(k, shape, jnp.float32, -bound, bound)

    return {
        "w1": uinit(ks[0], (hidden_size, input_size), input_size),
        "b1": uinit(ks[1], (hidden_size,), input_size),
        "w2": uinit(ks[2], (half, hidden_size), hidden_size),
        "b2": uinit(ks[3], (half,), hidden_size),
        "w3": uinit(ks[4], (num_classes, half), half),
        "b3": uinit(ks[5], (num_classes,), half),
    }


def reference_forward(x, p, num_classes):
    """Pure-JAX reference with the same bf16-weight / f32-accumulate numerics."""
    xb = x.astype(jnp.bfloat16)
    nt = (((1,), (1,)), ((), ()))
    h1 = jnp.maximum(
        lax.dot_general(p["w1"], xb, nt, preferred_element_type=jnp.float32)
        + p["b1"], 0.0)
    h2 = jnp.maximum(
        jnp.dot(p["w2"], h1.astype(jnp.bfloat16),
                preferred_element_type=jnp.float32) + p["b2"], 0.0)
    outT = jnp.dot(p["w3"], h2.astype(jnp.bfloat16),
                   preferred_element_type=jnp.float32) + p["b3"]
    return outT[:num_classes].T


if __name__ == "__main__":
    key = jax.random.PRNGKey(0)
    kx, kp = jax.random.split(key)

    input_size, hidden_size, num_classes = 32, 64, 2
    raw_params = init_params(kp, input_size, hidden_size, num_classes)
    params = prepare_params(raw_params)   # one-time: bf16 [out,in] weights, padded out layer

    # Exercise both the single-tile (tiny batch, padded to one 128-wide tile)
    # and the multi-tile (non-multiple batch, 2 grid steps) paths.
    for batch in (8, 300):
        x = jax.random.normal(jax.random.fold_in(kx, batch),
                              (batch, input_size), jnp.float32)
        out = jax.block_until_ready(
            phishing_mlp_forward(x, params, num_classes=num_classes))
        ref = reference_forward(x, params, num_classes)
        assert out.shape == (batch, num_classes)
        assert jnp.allclose(out, ref, atol=1e-2, rtol=1e-2), "mismatch vs JAX reference"

    print("KERNEL_OK")
</pallas_src>

<mosaic_0001>
module attributes {stable_mosaic.version = 11 : i64} {
  func.func @_mlp_kernel(%arg0: i32, %arg1: memref<128x32xf32, #tpu.memory_space<vmem>>, %arg2: memref<64x32xbf16, #tpu.memory_space<vmem>>, %arg3: memref<64x1xf32, #tpu.memory_space<vmem>>, %arg4: memref<32x64xbf16, #tpu.memory_space<vmem>>, %arg5: memref<32x1xf32, #tpu.memory_space<vmem>>, %arg6: memref<8x32xbf16, #tpu.memory_space<vmem>>, %arg7: memref<8x1xf32, #tpu.memory_space<vmem>>, %arg8: memref<8x128xf32, #tpu.memory_space<vmem>>) attributes {dimension_semantics = [#tpu.dimension_semantics<parallel>], iteration_bounds = array<i64: 1>, scalar_prefetch = 0 : i64, scratch_operands = 0 : i64, tpu.core_type = #tpu.core_type<tc>, window_params = [{transform_indices = @transform_0, window_bounds = array<i64: 128, 32>}, {pipeline_mode = #tpu.pipeline_mode<synchronous>, transform_indices = @transform_1, window_bounds = array<i64: 64, 32>}, {pipeline_mode = #tpu.pipeline_mode<synchronous>, transform_indices = @transform_2, window_bounds = array<i64: 64, 1>}, {pipeline_mode = #tpu.pipeline_mode<synchronous>, transform_indices = @transform_3, window_bounds = array<i64: 32, 64>}, {pipeline_mode = #tpu.pipeline_mode<synchronous>, transform_indices = @transform_4, window_bounds = array<i64: 32, 1>}, {pipeline_mode = #tpu.pipeline_mode<synchronous>, transform_indices = @transform_5, window_bounds = array<i64: 8, 32>}, {pipeline_mode = #tpu.pipeline_mode<synchronous>, transform_indices = @transform_6, window_bounds = array<i64: 8, 1>}, {transform_indices = @transform_7, window_bounds = array<i64: 8, 128>}]} {
    %c0 = arith.constant 0 : index
    %c0_0 = arith.constant 0 : index
    %0 = vector.load %arg1[%c0, %c0_0] : memref<128x32xf32, #tpu.memory_space<vmem>>, vector<128x32xf32>
    %1 = arith.truncf %0 : vector<128x32xf32> to vector<128x32xbf16>
    %c0_1 = arith.constant 0 : index
    %c0_2 = arith.constant 0 : index
    %2 = vector.load %arg2[%c0_1, %c0_2] : memref<64x32xbf16, #tpu.memory_space<vmem>>, vector<64x32xbf16>
    %cst = arith.constant dense<0.000000e+00> : vector<64x128xf32>
    %3 = tpu.matmul %2, %1, %cst {dimension_numbers = #tpu.dot_dimension_numbers<[1], [1], [0], [0], [0, 0, 1, 0], [], []>} : vector<64x32xbf16>, vector<128x32xbf16>, vector<64x128xf32> -> vector<64x128xf32>
    %c0_3 = arith.constant 0 : index
    %c0_4 = arith.constant 0 : index
    %4 = vector.load %arg3[%c0_3, %c0_4] : memref<64x1xf32, #tpu.memory_space<vmem>>, vector<64x1xf32>
    %5 = vector.broadcast %4 : vector<64x1xf32> to vector<64x128xf32>
    %6 = arith.addf %3, %5 : vector<64x128xf32>
    %cst_5 = arith.constant 0.000000e+00 : f32
    %7 = vector.broadcast %cst_5 : f32 to vector<64x128xf32>
    %8 = arith.maximumf %6, %7 : vector<64x128xf32>
    %c0_6 = arith.constant 0 : index
    %c0_7 = arith.constant 0 : index
    %9 = vector.load %arg4[%c0_6, %c0_7] : memref<32x64xbf16, #tpu.memory_space<vmem>>, vector<32x64xbf16>
    %10 = arith.truncf %8 : vector<64x128xf32> to vector<64x128xbf16>
    %cst_8 = arith.constant dense<0.000000e+00> : vector<32x128xf32>
    %11 = tpu.matmul %9, %10, %cst_8 {dimension_numbers = #tpu.dot_dimension_numbers<[1], [0], [0], [1], [0, 0, 1, 1], [], []>} : vector<32x64xbf16>, vector<64x128xbf16>, vector<32x128xf32> -> vector<32x128xf32>
    %c0_9 = arith.constant 0 : index
    %c0_10 = arith.constant 0 : index
    %12 = vector.load %arg5[%c0_9, %c0_10] : memref<32x1xf32, #tpu.memory_space<vmem>>, vector<32x1xf32>
    %13 = vector.broadcast %12 : vector<32x1xf32> to vector<32x128xf32>
    %14 = arith.addf %11, %13 : vector<32x128xf32>
    %cst_11 = arith.constant 0.000000e+00 : f32
    %15 = vector.broadcast %cst_11 : f32 to vector<32x128xf32>
    %16 = arith.maximumf %14, %15 : vector<32x128xf32>
    %c0_12 = arith.constant 0 : index
    %c0_13 = arith.constant 0 : index
    %17 = vector.load %arg6[%c0_12, %c0_13] : memref<8x32xbf16, #tpu.memory_space<vmem>>, vector<8x32xbf16>
    %18 = arith.truncf %16 : vector<32x128xf32> to vector<32x128xbf16>
    %cst_14 = arith.constant dense<0.000000e+00> : vector<8x128xf32>
    %19 = tpu.matmul %17, %18, %cst_14 {dimension_numbers = #tpu.dot_dimension_numbers<[1], [0], [0], [1], [0, 0, 1, 1], [], []>} : vector<8x32xbf16>, vector<32x128xbf16>, vector<8x128xf32> -> vector<8x128xf32>
    %c0_15 = arith.constant 0 : index
    %c0_16 = arith.constant 0 : index
    %20 = vector.load %arg7[%c0_15, %c0_16] : memref<8x1xf32, #tpu.memory_space<vmem>>, vector<8x1xf32>
    %21 = vector.broadcast %20 : vector<8x1xf32> to vector<8x128xf32>
    %22 = arith.addf %19, %21 : vector<8x128xf32>
    %c0_17 = arith.constant 0 : index
    %c0_18 = arith.constant 0 : index
    %23 = vector.load %arg8[%c0_17, %c0_18] : memref<8x128xf32, #tpu.memory_space<vmem>>, vector<8x128xf32>
    tpu.vector_store %arg8[%c0_17, %c0_18], %22 {strides = array<i32>} : memref<8x128xf32, #tpu.memory_space<vmem>>, vector<8x128xf32>,
    return
  }
  func.func @transform_0(%arg0: i32) -> (i32, i32) {
    %c0_i32 = arith.constant 0 : i32
    %c0_i32_0 = arith.constant 0 : i32
    return %arg0, %c0_i32 : i32, i32
  }
  func.func @transform_1(%arg0: i32) -> (i32, i32) {
    %c0_i32 = arith.constant 0 : i32
    %c0_i32_0 = arith.constant 0 : i32
    %c0_i32_1 = arith.constant 0 : i32
    return %c0_i32, %c0_i32_0 : i32, i32
  }
  func.func @transform_2(%arg0: i32) -> (i32, i32) {
    %c0_i32 = arith.constant 0 : i32
    %c0_i32_0 = arith.constant 0 : i32
    %c0_i32_1 = arith.constant 0 : i32
    return %c0_i32, %c0_i32_0 : i32, i32
  }
  func.func @transform_3(%arg0: i32) -> (i32, i32) {
    %c0_i32 = arith.constant 0 : i32
    %c0_i32_0 = arith.constant 0 : i32
    %c0_i32_1 = arith.constant 0 : i32
    return %c0_i32, %c0_i32_0 : i32, i32
  }
  func.func @transform_4(%arg0: i32) -> (i32, i32) {
    %c0_i32 = arith.constant 0 : i32
    %c0_i32_0 = arith.constant 0 : i32
    %c0_i32_1 = arith.constant 0 : i32
    return %c0_i32, %c0_i32_0 : i32, i32
  }
  func.func @transform_5(%arg0: i32) -> (i32, i32) {
    %c0_i32 = arith.constant 0 : i32
    %c0_i32_0 = arith.constant 0 : i32
    %c0_i32_1 = arith.constant 0 : i32
    return %c0_i32, %c0_i32_0 : i32, i32
  }
  func.func @transform_6(%arg0: i32) -> (i32, i32) {
    %c0_i32 = arith.constant 0 : i32
    %c0_i32_0 = arith.constant 0 : i32
    %c0_i32_1 = arith.constant 0 : i32
    return %c0_i32, %c0_i32_0 : i32, i32
  }
  func.func @transform_7(%arg0: i32) -> (i32, i32) {
    %c0_i32 = arith.constant 0 : i32
    %c0_i32_0 = arith.constant 0 : i32
    return %c0_i32, %arg0 : i32, i32
  }
}

</mosaic_0001>

<llo_original>
// kernel: phishing_mlp_forward.1
$region0: #{phishing_mlp_forward.1}
  #allocation0 [shape = 'u32[]', space=smem, size = 0x4, offset = 0x4, fixed_abs, tag = 'smem constant byte address 0x4 - core index']
  #allocation1 [shape = 'u32[72,128]{1,0:T(1,128)}', space=vmem, size = 0x9000, scoped, tag = 'internal scratch']
  %s0 = inlined_call_operand.vmem [shape: f32[128,32], index: 0, kind: input, shape index: {}]
  %s1 = inlined_call_operand.vmem [shape: bf16[64,32], index: 1, kind: input, shape index: {}]
  %s2 = inlined_call_operand.vmem [shape: f32[64,1], index: 2, kind: input, shape index: {}]
  %s3 = inlined_call_operand.vmem [shape: bf16[32,64], index: 3, kind: input, shape index: {}]
  %s4 = inlined_call_operand.vmem [shape: f32[32,1], index: 4, kind: input, shape index: {}]
  %s5 = inlined_call_operand.vmem [shape: bf16[8,32], index: 5, kind: input, shape index: {}]
  %s6 = inlined_call_operand.vmem [shape: f32[8,1], index: 6, kind: input, shape index: {}]
  %s7 = inlined_call_operand.vmem [shape: f32[8,128], index: 7, kind: output, shape index: {}]
  %s8 = sld [smem:[#allocation0]]
  $region38: #{phishing_mlp_forward.1} parent=0
    _
  %s10 = ssub.s32 1, %s8
  %s11 = scalar_select 0, %s10, %s8
  // Predicated region
  $region2: #{phishing_mlp_forward.1} parent=0 // pred_check
    _
  $region3: #{phishing_mlp_forward.1} parent=0 // pred_check_branch
    %13 = sbr.rel (0) target = $region5
  $region4: #{phishing_mlp_forward.1} parent=0 // pred_region
    _
  $region5: #{phishing_mlp_forward.1} parent=0 // pred_fallthru
    _
  // Predicated region
  $region6: #{phishing_mlp_forward.1} parent=0 // pred_check
    _
  $region7: #{phishing_mlp_forward.1} parent=0 // pred_check_branch
    %15 = sbr.rel (0) target = $region9
  $region8: #{phishing_mlp_forward.1} parent=0 // pred_region
    _
  $region9: #{phishing_mlp_forward.1} parent=0 // pred_fallthru
    _
  // Predicated region
  $region10: #{phishing_mlp_forward.1} parent=0 // pred_check
    _
  $region11: #{phishing_mlp_forward.1} parent=0 // pred_check_branch
    %17 = sbr.rel (0) target = $region13
  $region12: #{phishing_mlp_forward.1} parent=0 // pred_region
    _
  $region13: #{phishing_mlp_forward.1} parent=0 // pred_fallthru
    _
  // Predicated region
  $region14: #{phishing_mlp_forward.1} parent=0 // pred_check
    _
  $region15: #{phishing_mlp_forward.1} parent=0 // pred_check_branch
    %19 = sbr.rel (0) target = $region17
  $region16: #{phishing_mlp_forward.1} parent=0 // pred_region
    _
  $region17: #{phishing_mlp_forward.1} parent=0 // pred_fallthru
    _
  // Predicated region
  $region18: #{phishing_mlp_forward.1} parent=0 // pred_check
    _
  $region19: #{phishing_mlp_forward.1} parent=0 // pred_check_branch
    %21 = sbr.rel (0) target = $region21
  $region20: #{phishing_mlp_forward.1} parent=0 // pred_region
    _
  $region21: #{phishing_mlp_forward.1} parent=0 // pred_fallthru
    _
  // Predicated region
  $region22: #{phishing_mlp_forward.1} parent=0 // pred_check
    _
  $region23: #{phishing_mlp_forward.1} parent=0 // pred_check_branch
    %23 = sbr.rel (0) target = $region25
  $region24: #{phishing_mlp_forward.1} parent=0 // pred_region
    _
  $region25: #{phishing_mlp_forward.1} parent=0 // pred_fallthru
    _
  // Predicated region
  $region26: #{phishing_mlp_forward.1} parent=0 // pred_check
    _
  $region27: #{phishing_mlp_forward.1} parent=0 // pred_check_branch
    %25 = sbr.rel (0) target = $region29
  $region28: #{phishing_mlp_forward.1} parent=0 // pred_region
    _
  $region29: #{phishing_mlp_forward.1} parent=0 // pred_fallthru
    _
  %v27 = vld [vmem:[%s0] sm:$0xff]
  %v28 = vld [vmem:[%s0 + $0x8] sm:$0xff]
  %v29 = vld [vmem:[%s0 + $0x10] sm:$0xff]
  %v30 = vld [vmem:[%s0 + $0x18] sm:$0xff]
  %v31 = vld [vmem:[%s0 + $0x20] sm:$0xff]
  %v32 = vld [vmem:[%s0 + $0x28] sm:$0xff]
  %v33 = vld [vmem:[%s0 + $0x30] sm:$0xff]
  %v34 = vld [vmem:[%s0 + $0x38] sm:$0xff]
  %v35 = vld [vmem:[%s0 + $0x40] sm:$0xff]
  %v36 = vld [vmem:[%s0 + $0x48] sm:$0xff]
  %v37 = vld [vmem:[%s0 + $0x50] sm:$0xff]
  %v38 = vld [vmem:[%s0 + $0x58] sm:$0xff]
  %v39 = vld [vmem:[%s0 + $0x60] sm:$0xff]
  %v40 = vld [vmem:[%s0 + $0x68] sm:$0xff]
  %v41 = vld [vmem:[%s0 + $0x70] sm:$0xff]
  %v42 = vld [vmem:[%s0 + $0x78] sm:$0xff]
  %v43 = vpack.c.bf16 %v28, %v27
  %v44 = vpack.c.bf16 %v30, %v29
  %v45 = vpack.c.bf16 %v32, %v31
  %v46 = vpack.c.bf16 %v34, %v33
  %v47 = vpack.c.bf16 %v36, %v35
  %v48 = vpack.c.bf16 %v38, %v37
  %v49 = vpack.c.bf16 %v40, %v39
  %v50 = vpack.c.bf16 %v42, %v41
  %v51 = vld [vmem:[%s1] sm:$0xf]
  %v52 = vld [vmem:[%s1 + $0x4] sm:$0xf]
  %v53 = vld [vmem:[%s1 + $0x8] sm:$0xf]
  %v54 = vld [vmem:[%s1 + $0xc] sm:$0xf]
  %v55 = vld [vmem:[%s1 + $0x10] sm:$0xf]
  %v56 = vld [vmem:[%s1 + $0x14] sm:$0xf]
  %v57 = vld [vmem:[%s1 + $0x18] sm:$0xf]
  %v58 = vld [vmem:[%s1 + $0x1c] sm:$0xf]
  %v59 = vld [vmem:[%s2] sm:$0xff]
  %v60 = vld [vmem:[%s2 + $0x8] sm:$0xff]
  %v61 = vld [vmem:[%s2 + $0x10] sm:$0xff]
  %v62 = vld [vmem:[%s2 + $0x18] sm:$0xff]
  %v63 = vld [vmem:[%s2 + $0x20] sm:$0xff]
  %v64 = vld [vmem:[%s2 + $0x28] sm:$0xff]
  %v65 = vld [vmem:[%s2 + $0x30] sm:$0xff]
  %v66 = vld [vmem:[%s2 + $0x38] sm:$0xff]
  %68 = vset.pattern.permute.xlu0 0
  %69 = vperm.xlu0 %68, %v59
  %v70 = vpop.permute.xlu0 %69
  %73 = vset.pattern.permute.xlu0 0
  %74 = vperm.xlu0 %73, %v60
  %v75 = vpop.permute.xlu0 %74
  %78 = vset.pattern.permute.xlu0 0
  %79 = vperm.xlu0 %78, %v61
  %v80 = vpop.permute.xlu0 %79
  %83 = vset.pattern.permute.xlu0 0
  %84 = vperm.xlu0 %83, %v62
  %v85 = vpop.permute.xlu0 %84
  %88 = vset.pattern.permute.xlu0 0
  %89 = vperm.xlu0 %88, %v63
  %v90 = vpop.permute.xlu0 %89
  %93 = vset.pattern.permute.xlu0 0
  %94 = vperm.xlu0 %93, %v64
  %v95 = vpop.permute.xlu0 %94
  %98 = vset.pattern.permute.xlu0 0
  %99 = vperm.xlu0 %98, %v65
  %v100 = vpop.permute.xlu0 %99
  %103 = vset.pattern.permute.xlu0 0
  %104 = vperm.xlu0 %103, %v66
  %v105 = vpop.permute.xlu0 %104
  %v115 = vunpack.c.l.b16 %v51
  %v116 = vunpack.c.l.b16 %v52
  %v117 = vunpack.c.l.b16 %v53
  %v118 = vunpack.c.l.b16 %v54
  %v119 = vunpack.c.l.b16 %v55
  %v120 = vunpack.c.l.b16 %v56
  %v121 = vunpack.c.l.b16 %v57
  %v122 = vunpack.c.l.b16 %v58
  %v123 = vpack.c.b16 %v116, %v115
  %v124 = vpack.c.b16 %v118, %v117
  %v125 = vpack.c.b16 %v120, %v119
  %v126 = vpack.c.b16 %v122, %v121
  %vm127 = vcmask 261120
  %v129 = vsel %vm127, %v123, 0
  %v132 = vsel %vm127, %v124, 0
  %v135 = vsel %vm127, %v125, 0
  %v138 = vsel %vm127, %v126, 0
  %v141 = vsel %vm127, %v43, 0
  %v144 = vsel %vm127, %v44, 0
  %v147 = vsel %vm127, %v45, 0
  %v150 = vsel %vm127, %v46, 0
  %v153 = vsel %vm127, %v47, 0
  %v156 = vsel %vm127, %v48, 0
  %v159 = vsel %vm127, %v49, 0
  %v162 = vsel %vm127, %v50, 0
  %164 = vmatpush.bf16.xpose.msra.mxu0 %v162
  %165 = vmatpush.bf16.xpose.msra.mxu0 %v159
  %166 = vmatpush.bf16.xpose.msra.mxu0 %v156
  %167 = vmatpush.bf16.xpose.msra.mxu0 %v153
  %168 = vmatpush.bf16.xpose.msra.mxu0 %v150
  %169 = vmatpush.bf16.xpose.msra.mxu0 %v147
  %170 = vmatpush.bf16.xpose.msra.mxu0 %v144
  %171 = vmatpush.bf16.xpose.msra.mxu0 %v141
  %172 = vmatmul.bf16.gmra.mxu0 %v129
  %v173 = vpop.f32.mrf.mxu0
  %v174 = vadd.f32 %v70, %v173
  %v175 = vpop.f32.mrf.mxu0
  %v176 = vadd.f32 %v75, %v175
  %177 = vmatmul.bf16.gmra.mxu0 %v132
  %v178 = vpop.f32.mrf.mxu0
  %v179 = vadd.f32 %v80, %v178
  %v180 = vpop.f32.mrf.mxu0
  %v181 = vadd.f32 %v85, %v180
  %182 = vmatmul.bf16.gmra.mxu0 %v135
  %v183 = vpop.f32.mrf.mxu0
  %v184 = vadd.f32 %v90, %v183
  %v185 = vpop.f32.mrf.mxu0
  %v186 = vadd.f32 %v95, %v185
  %187 = vmatmul.bf16.gmra.mxu0 %v138
  %v188 = vpop.f32.mrf.mxu0
  %v189 = vadd.f32 %v100, %v188
  %v190 = vpop.f32.mrf.mxu0
  %v191 = vadd.f32 %v105, %v190
  %192 = vdwg.mxu0
  %v193 = vmax.f32 %v174, 0.0
  %v194 = vmax.f32 %v176, 0.0
  %v195 = vmax.f32 %v179, 0.0
  %v196 = vmax.f32 %v181, 0.0
  %v197 = vmax.f32 %v184, 0.0
  %v198 = vmax.f32 %v186, 0.0
  %v199 = vmax.f32 %v189, 0.0
  %v200 = vmax.f32 %v191, 0.0
  %v201 = vld [vmem:[%s3] sm:$0xf]
  %v202 = vld [vmem:[%s3 + $0x4] sm:$0xf]
  %v203 = vld [vmem:[%s3 + $0x8] sm:$0xf]
  %v204 = vld [vmem:[%s3 + $0xc] sm:$0xf]
  %v205 = vpack.c.bf16 %v194, %v193
  %v206 = vpack.c.bf16 %v196, %v195
  %v207 = vpack.c.bf16 %v198, %v197
  %v208 = vpack.c.bf16 %v200, %v199
  %v209 = vld [vmem:[%s4] sm:$0xff]
  %v210 = vld [vmem:[%s4 + $0x8] sm:$0xff]
  %v211 = vld [vmem:[%s4 + $0x10] sm:$0xff]
  %v212 = vld [vmem:[%s4 + $0x18] sm:$0xff]
  %214 = vset.pattern.permute.xlu0 0
  %215 = vperm.xlu0 %214, %v209
  %v216 = vpop.permute.xlu0 %215
  %219 = vset.pattern.permute.xlu0 0
  %220 = vperm.xlu0 %219, %v210
  %v221 = vpop.permute.xlu0 %220
  %224 = vset.pattern.permute.xlu0 0
  %225 = vperm.xlu0 %224, %v211
  %v226 = vpop.permute.xlu0 %225
  %229 = vset.pattern.permute.xlu0 0
  %230 = vperm.xlu0 %229, %v212
  %v231 = vpop.permute.xlu0 %230
  %v237 = vunpack.c.l.b16 %v201
  %v238 = vunpack.c.l.b16 %v202
  %v239 = vunpack.c.l.b16 %v203
  %v240 = vunpack.c.l.b16 %v204
  %v241 = vpack.c.b16 %v238, %v237
  %v242 = vpack.c.b16 %v240, %v239
  %vm243 = vcmask 523264
  %v245 = vsel %vm243, %v241, 0
  %v248 = vsel %vm243, %v242, 0
  %250 = vmatpush.bf16.msra.mxu0 0
  %251 = vmatpush.bf16.msra.mxu0 0
  %252 = vmatpush.bf16.msra.mxu0 0
  %253 = vmatpush.bf16.msra.mxu0 0
  %254 = vmatpush.bf16.msra.mxu0 %v208
  %255 = vmatpush.bf16.msra.mxu0 %v207
  %256 = vmatpush.bf16.msra.mxu0 %v206
  %257 = vmatpush.bf16.msra.mxu0 %v205
  %258 = vmatmul.bf16.gmra.mxu0 %v245
  %v259 = vpop.f32.mrf.mxu0
  %v260 = vadd.f32 %v216, %v259
  %v261 = vpop.f32.mrf.mxu0
  %v262 = vadd.f32 %v221, %v261
  %263 = vmatmul.bf16.gmra.mxu0 %v248
  %v264 = vpop.f32.mrf.mxu0
  %v265 = vadd.f32 %v226, %v264
  %v266 = vpop.f32.mrf.mxu0
  %v267 = vadd.f32 %v231, %v266
  %268 = vdwg.mxu0
  %v269 = vmax.f32 %v260, 0.0
  %v270 = vmax.f32 %v262, 0.0
  %v271 = vmax.f32 %v265, 0.0
  %v272 = vmax.f32 %v267, 0.0
  %v273 = vld [vmem:[%s5] sm:$0xf]
  %v274 = vpack.c.bf16 %v270, %v269
  %v275 = vpack.c.bf16 %v272, %v271
  %v276 = vld [vmem:[%s6] sm:$0xff]
  %278 = vset.pattern.permute.xlu0 0
  %279 = vperm.xlu0 %278, %v276
  %v280 = vpop.permute.xlu0 %279
  %v283 = vsel %vm127, %v273, 0
  %285 = vmatpush.bf16.msra.mxu0 0
  %286 = vmatpush.bf16.msra.mxu0 0
  %287 = vmatpush.bf16.msra.mxu0 0
  %288 = vmatpush.bf16.msra.mxu0 0
  %289 = vmatpush.bf16.msra.mxu0 0
  %290 = vmatpush.bf16.msra.mxu0 0
  %291 = vmatpush.bf16.msra.mxu0 %v275
  %292 = vmatpush.bf16.msra.mxu0 %v274
  %293 = vmatmul.bf16.gmra.mxu0 %v283
  %v294 = vpop.f32.mrf.mxu0
  %v295 = vadd.f32 %v280, %v294
  %v296 = vpop.f32.mrf.mxu0
  %297 = vdwg.mxu0
  %298 = vst [vmem:[%s7] sm:$0xff] %v295
  // Predicated region
  $region30: #{phishing_mlp_forward.1} parent=0 // pred_check
    _
  $region31: #{phishing_mlp_forward.1} parent=0 // pred_check_branch
    %300 = sbr.rel (0) target = $region33
  $region32: #{phishing_mlp_forward.1} parent=0 // pred_region
    _
  $region33: #{phishing_mlp_forward.1} parent=0 // pred_fallthru
    _
  // Predicated region
  $region34: #{phishing_mlp_forward.1} parent=0 // pred_check
    _
  $region35: #{phishing_mlp_forward.1} parent=0 // pred_check_branch
    %302 = sbr.rel (0) target = $region37
  $region36: #{phishing_mlp_forward.1} parent=0 // pred_region
    _
  $region37: #{phishing_mlp_forward.1} parent=0 // pred_fallthru
    _

</llo_original>
